<compile_context>
chip_gen: v7x
topology: tpu7x:2x2x1
jax: 0.10.0
libtpu: 0.0.40
codegen_flags: <defaults>
</compile_context>

<pallas_src>
import functools
import math

import numpy as np
import jax
import jax.numpy as jnp
from jax.experimental import pallas as pl
from jax.experimental.pallas import tpu as pltpu

# -----------------------------------------------------------------------------
# Config (the ipa_conf of the PyTorch module)
# -----------------------------------------------------------------------------
C_S = 32            # single representation channels
C_Z = 16            # pair representation channels (not used by the forward math)
C_HIDDEN = 16       # per-head hidden dim (also the rotary dim)
NO_HEADS = 4
NO_QK_POINTS = 4
NO_V_POINTS = 8
INF = 1e5
EPS = 1e-8
MAX_POS = 512       # max_position_embeddings


# -----------------------------------------------------------------------------
# Pallas kernel: per-batch IPA attention (all heads inside)
# -----------------------------------------------------------------------------
def _ipa_attn_kernel(qf_ref, kf_ref, vf_ref, mrow_ref, mcol_ref, o_ref, *,
                     attn_scale, num_heads):
    # Mask bias computed in-kernel: INF * (m_i * m_j - 1)  -> [N, N]
    bias = INF * (mrow_ref[...] * mcol_ref[...] - 1.0)

    outs = []
    for h in range(num_heads):                       # H is small & static: unroll
        qf = qf_ref[h]                               # [N, Kf]  (fused channels)
        kf = kf_ref[h]                               # [N, Kf]
        # One MXU push per head: scalar QK + point cross + rank-1 |.|^2 terms.
        logits = jax.lax.dot_general(
            qf, kf, (((1,), (1,)), ((), ())),
            preferred_element_type=jnp.float32)      # [N, N]
        logits = (logits + bias) * attn_scale

        # numerically stable softmax along keys; normalization folded into the
        # output scale (post-matmul) via an approximate EUP reciprocal.
        logits = logits - jnp.max(logits, axis=-1, keepdims=True)
        p = jnp.exp(logits)
        inv = pl.reciprocal(jnp.sum(p, axis=-1, keepdims=True), approx=True)

        o_h = jnp.dot(p, vf_ref[h], preferred_element_type=jnp.float32)  # [N, Vf]
        outs.append(o_h * inv)

    # Single lane-dense store: [N, H * Vf] (>= 128 lanes).
    o_ref[...] = jnp.concatenate(outs, axis=-1)


def ipa_attention_pallas(q, k, v, q_pts, k_pts, v_pts, mask, hw, *,
                         qk_scale, attn_scale):
    """q,k,v: [B,N,H,C]; q_pts/k_pts: [B,N,H,Pqk,3]; v_pts: [B,N,H,Pv,3];
    mask: [B,N]; hw: [H]. Returns o [B,N,H,C], o_pt [B,N,H,Pv,3]."""
    B, N, H, C = q.shape
    Pqk = q_pts.shape[-2]
    Pv = v_pts.shape[-2]
    Kf = C + 3 * Pqk + 2                   # fused QK channels  (= 30)
    Vf = C + 3 * Pv                        # fused V  channels  (= 40)

    # ---- channel-fused Q' / K' / V' (wrapper-side layout plumbing) -----------
    hw_b = hw[None, None, :, None]                                   # [1,1,H,1]
    qp_flat = q_pts.reshape(B, N, H, 3 * Pqk)
    kp_flat = k_pts.reshape(B, N, H, 3 * Pqk)
    q_sq = (-0.5) * hw[None, None, :] * jnp.sum(q_pts * q_pts, axis=(-1, -2))
    k_sq = (-0.5) * hw[None, None, :] * jnp.sum(k_pts * k_pts, axis=(-1, -2))
    ones = jnp.ones((B, N, H), jnp.float32)

    qf = jnp.concatenate([q * qk_scale, hw_b * qp_flat,
                          ones[..., None], q_sq[..., None]], axis=-1)   # [B,N,H,Kf]
    kf = jnp.concatenate([k, kp_flat,
                          k_sq[..., None], ones[..., None]], axis=-1)   # [B,N,H,Kf]
    vf = jnp.concatenate([v, v_pts.reshape(B, N, H, 3 * Pv)], axis=-1)  # [B,N,H,Vf]

    # head-major for the kernel
    qf = jnp.transpose(qf, (0, 2, 1, 3))          # [B,H,N,Kf]
    kf = jnp.transpose(kf, (0, 2, 1, 3))
    vf = jnp.transpose(vf, (0, 2, 1, 3))          # [B,H,N,Vf]

    mrow = mask[:, :, None]                        # [B,N,1]
    mcol = mask[:, None, :]                        # [B,1,N]

    kernel = functools.partial(_ipa_attn_kernel,
                               attn_scale=attn_scale, num_heads=H)

    out = pl.pallas_call(
        kernel,
        out_shape=jax.ShapeDtypeStruct((B, N, H * Vf), jnp.float32),
        grid=(B,),
        in_specs=[
            pl.BlockSpec((None, H, N, Kf), lambda b: (b, 0, 0, 0)),   # Q'
            pl.BlockSpec((None, H, N, Kf), lambda b: (b, 0, 0, 0)),   # K'
            pl.BlockSpec((None, H, N, Vf), lambda b: (b, 0, 0, 0)),   # V'
            pl.BlockSpec((None, N, 1), lambda b: (b, 0, 0)),          # mask (col vec)
            pl.BlockSpec((None, 1, N), lambda b: (b, 0, 0)),          # mask (row vec)
        ],
        out_specs=pl.BlockSpec((None, N, H * Vf), lambda b: (b, 0, 0)),
        compiler_params=pltpu.CompilerParams(
            dimension_semantics=("parallel",)),
    )(qf, kf, vf, mrow, mcol)

    out = out.reshape(B, N, H, Vf)
    o = out[..., :C]                               # [B,N,H,C]
    o_pt = out[..., C:].reshape(B, N, H, Pv, 3)    # [B,N,H,Pv,3]
    return o, o_pt


# Pure-JAX reference for the attention core (sanity check only).
def ipa_attention_ref(q, k, v, q_pts, k_pts, v_pts, mask, hw, *,
                      qk_scale, attn_scale):
    a = jnp.einsum("bihc,bjhc->bhij", q, k) * qk_scale
    d = q_pts[:, :, None, :, :, :] - k_pts[:, None, :, :, :, :]   # [B,Ni,Nj,H,P,3]
    pt = jnp.sum(d * d, axis=(-1, -2))                             # [B,Ni,Nj,H]
    pt = jnp.transpose(pt, (0, 3, 1, 2)) * (hw[None, :, None, None] * (-0.5))
    sq = mask[:, :, None] * mask[:, None, :]
    bias = INF * (sq - 1.0)
    a = (a + pt + bias[:, None, :, :]) * attn_scale
    p = jax.nn.softmax(a, axis=-1)
    o = jnp.einsum("bhij,bjhc->bihc", p, v)                        # [B,N,H,C]
    o_pt = jnp.einsum("bhij,bjhpc->bihpc", p, v_pts)               # [B,N,H,Pv,3]
    return o, o_pt


# -----------------------------------------------------------------------------
# Glue: parameters, rotary embedding, rigid transforms, projections
# -----------------------------------------------------------------------------
def init_params(key):
    hc = C_HIDDEN * NO_HEADS
    hpq = NO_HEADS * NO_QK_POINTS * 3
    hpkv = NO_HEADS * (NO_QK_POINTS + NO_V_POINTS) * 3
    concat_out_dim = C_HIDDEN + NO_V_POINTS * 4
    ks = jax.random.split(key, 8)

    def w(k, o, i, scale=0.02):
        return scale * jax.random.normal(k, (o, i), jnp.float32)

    return {
        "w_q": w(ks[0], hc, C_S), "b_q": jnp.zeros((hc,), jnp.float32),
        "w_kv": w(ks[1], 2 * hc, C_S), "b_kv": jnp.zeros((2 * hc,), jnp.float32),
        "w_qp": w(ks[2], hpq, C_S), "b_qp": jnp.zeros((hpq,), jnp.float32),
        "w_kvp": w(ks[3], hpkv, C_S), "b_kvp": jnp.zeros((hpkv,), jnp.float32),
        # linear_b / down_z exist in __init__ but are never used in forward().
        "w_b": w(ks[4], NO_HEADS, C_Z), "b_b": jnp.zeros((NO_HEADS,), jnp.float32),
        "w_dz": w(ks[5], C_Z // 4, C_Z), "b_dz": jnp.zeros((C_Z // 4,), jnp.float32),
        # ipa_point_weights_init_: softplus^{-1}(1)
        "head_weights": jnp.full((NO_HEADS,), 0.541324854612918, jnp.float32),
        "w_out": w(ks[6], C_S, NO_HEADS * concat_out_dim),
        "b_out": jnp.zeros((C_S,), jnp.float32),
    }


def rotate_half(x):
    half = x.shape[-1] // 2
    return jnp.concatenate([-x[..., half:], x[..., :half]], axis=-1)


def rotary_cos_sin(seq_len, dim, base=10000.0, max_pos=MAX_POS):
    # Dynamic NTK scaling only triggers when seq_len > max_pos; not the case here.
    inv_freq = 1.0 / (base ** (jnp.arange(0, dim, 2, dtype=jnp.float32) / dim))
    t = jnp.arange(max_pos, dtype=jnp.float32)
    freqs = jnp.outer(t, inv_freq)
    emb = jnp.concatenate([freqs, freqs], axis=-1)
    return jnp.cos(emb)[:seq_len], jnp.sin(emb)[:seq_len]


def quat_to_rot(q):
    q = q / jnp.linalg.norm(q, axis=-1, keepdims=True)
    w, x, y, z = q[..., 0], q[..., 1], q[..., 2], q[..., 3]
    rot = jnp.stack([
        1 - 2 * (y * y + z * z), 2 * (x * y - w * z), 2 * (x * z + w * y),
        2 * (x * y + w * z), 1 - 2 * (x * x + z * z), 2 * (y * z - w * x),
        2 * (x * z - w * y), 2 * (y * z + w * x), 1 - 2 * (x * x + y * y),
    ], axis=-1)
    return rot.reshape(q.shape[:-1] + (3, 3))


def s_invariant_point_attention(params, s, z, rot, trans, position_ids, mask,
                                attn_fn=ipa_attention_pallas):
    """Forward pass of SInvariantPointAttention. Returns (s_update, None)."""
    del z  # TODO(synk): z / linear_b / down_z are never used in the reference forward().
    B, N, _ = s.shape
    H, C, Pqk, Pv = NO_HEADS, C_HIDDEN, NO_QK_POINTS, NO_V_POINTS

    lin = lambda x, w, b: jnp.dot(x, w.T) + b

    q = lin(s, params["w_q"], params["b_q"]).reshape(B, N, H, C)
    kv = lin(s, params["w_kv"], params["b_kv"]).reshape(B, N, H, 2 * C)
    k, v = kv[..., :C], kv[..., C:]

    def apply_rigid(pts):  # pts: [B, N, P, 3]
        return jnp.einsum("bnij,bnpj->bnpi", rot, pts) + trans[:, :, None, :]

    q_pts = lin(s, params["w_qp"], params["b_qp"])
    q_pts = jnp.stack(jnp.split(q_pts, 3, axis=-1), axis=-1)       # [B,N,H*Pqk,3]
    q_pts = apply_rigid(q_pts).reshape(B, N, H, Pqk, 3)

    kv_pts = lin(s, params["w_kvp"], params["b_kvp"])
    kv_pts = jnp.stack(jnp.split(kv_pts, 3, axis=-1), axis=-1)     # [B,N,H*(Pqk+Pv),3]
    kv_pts = apply_rigid(kv_pts).reshape(B, N, H, Pqk + Pv, 3)
    k_pts, v_pts = kv_pts[..., :Pqk, :], kv_pts[..., Pqk:, :]

    # Rotary embedding (faithful to reference: kv_seq_len = k.shape[0], i.e. batch dim).
    kv_seq_len = k.shape[0]
    cos_c, sin_c = rotary_cos_sin(kv_seq_len, C)
    cos = cos_c[position_ids][:, :, None, :]                       # [B,N,1,C]
    sin = sin_c[position_ids][:, :, None, :]
    q = q * cos + rotate_half(q) * sin
    k = k * cos + rotate_half(k) * sin

    hw = jax.nn.softplus(params["head_weights"]) * math.sqrt(
        1.0 / (3.0 * (Pqk * 9.0 / 2.0)))
    qk_scale = math.sqrt(1.0 / (3.0 * C))
    attn_scale = math.log(N) / math.log(MAX_POS / 2)               # math.log(length, 256)

    o, o_pt = attn_fn(q, k, v, q_pts, k_pts, v_pts, mask, hw,
                      qk_scale=qk_scale, attn_scale=attn_scale)

    # o: [B,N,H,C] -> [B,N,H*C]
    o = o.reshape(B, N, H * C)
    # invert rigid on o_pt: R^T (x - t)
    o_pt = jnp.einsum("bnji,bnhpj->bnhpi", rot,
                      o_pt - trans[:, :, None, None, :])           # [B,N,H,Pv,3]
    o_pt_dists = jnp.sqrt(jnp.sum(o_pt ** 2, axis=-1) + EPS)       # [B,N,H,Pv]
    o_pt_norm_feats = o_pt_dists.reshape(B, N, H * Pv)
    o_pt_flat = o_pt.reshape(B, N, H * Pv, 3)

    feats = jnp.concatenate(
        [o, o_pt_flat[..., 0], o_pt_flat[..., 1], o_pt_flat[..., 2],
         o_pt_norm_feats], axis=-1)
    s_upd = lin(feats, params["w_out"], params["b_out"])
    return s_upd, None


# -----------------------------------------------------------------------------
# Demo / sanity check
# -----------------------------------------------------------------------------
if __name__ == "__main__":
    key = jax.random.PRNGKey(0)
    k_par, k_s, k_z, k_q, k_t = jax.random.split(key, 5)

    B, N = 2, 8
    params = init_params(k_par)

    s = jax.random.normal(k_s, (B, N, C_S), jnp.float32)
    z = jax.random.normal(k_z, (B, N, N, C_Z), jnp.float32)        # unused by forward math
    rot = quat_to_rot(jax.random.normal(k_q, (B, N, 4), jnp.float32))
    trans = jax.random.normal(k_t, (B, N, 3), jnp.float32)
    mask = jnp.ones((B, N), jnp.float32).at[1, -1].set(0.0)
    # position_ids must index the rotary cache of length kv_seq_len (= batch dim here)
    position_ids = jnp.tile(jnp.arange(N, dtype=jnp.int32) % B, (B, 1))

    out_pl, _ = s_invariant_point_attention(
        params, s, z, rot, trans, position_ids, mask, attn_fn=ipa_attention_pallas)
    out_pl = jax.block_until_ready(out_pl)
    assert out_pl.shape == (B, N, C_S)

    out_ref, _ = s_invariant_point_attention(
        params, s, z, rot, trans, position_ids, mask, attn_fn=ipa_attention_ref)
    out_ref = jax.block_until_ready(out_ref)
    # Tolerance accounts for the approximate (EUP) softmax reciprocal.
    np.testing.assert_allclose(np.asarray(out_pl), np.asarray(out_ref),
                               rtol=5e-3, atol=5e-3)

    print("KERNEL_OK")
</pallas_src>

<mosaic_0001>
module attributes {stable_mosaic.version = 11 : i64} {
  func.func @_ipa_attn_kernel(%arg0: i32, %arg1: memref<1x4x8x30xf32, #tpu.memory_space<vmem>>, %arg2: memref<1x4x8x30xf32, #tpu.memory_space<vmem>>, %arg3: memref<1x4x8x40xf32, #tpu.memory_space<vmem>>, %arg4: memref<1x8x1xf32, #tpu.memory_space<vmem>>, %arg5: memref<1x1x8xf32, #tpu.memory_space<vmem>>, %arg6: memref<1x8x160xf32, #tpu.memory_space<vmem>>) attributes {dimension_semantics = [#tpu.dimension_semantics<parallel>], iteration_bounds = array<i64: 2>, scalar_prefetch = 0 : i64, scratch_operands = 0 : i64, tpu.core_type = #tpu.core_type<tc>, window_params = [{transform_indices = @transform_0, window_bounds = array<i64: 1, 4, 8, 30>}, {transform_indices = @transform_1, window_bounds = array<i64: 1, 4, 8, 30>}, {transform_indices = @transform_2, window_bounds = array<i64: 1, 4, 8, 40>}, {transform_indices = @transform_3, window_bounds = array<i64: 1, 8, 1>}, {transform_indices = @transform_4, window_bounds = array<i64: 1, 1, 8>}, {transform_indices = @transform_5, window_bounds = array<i64: 1, 8, 160>}]} {
    %c0 = arith.constant 0 : index
    %c0_0 = arith.constant 0 : index
    %c0_1 = arith.constant 0 : index
    %0 = vector.load %arg4[%c0, %c0_0, %c0_1] : memref<1x8x1xf32, #tpu.memory_space<vmem>>, vector<1x8x1xf32>
    %1 = vector.shape_cast %0 : vector<1x8x1xf32> to vector<8x1xf32>
    %c0_2 = arith.constant 0 : index
    %c0_3 = arith.constant 0 : index
    %c0_4 = arith.constant 0 : index
    %2 = vector.load %arg5[%c0_2, %c0_3, %c0_4] : memref<1x1x8xf32, #tpu.memory_space<vmem>>, vector<1x1x8xf32>
    %3 = vector.shape_cast %2 : vector<1x1x8xf32> to vector<1x8xf32>
    %4 = vector.broadcast %1 : vector<8x1xf32> to vector<8x8xf32>
    %5 = vector.broadcast %3 : vector<1x8xf32> to vector<8x8xf32>
    %6 = arith.mulf %4, %5 : vector<8x8xf32>
    %cst = arith.constant 1.000000e+00 : f32
    %7 = vector.broadcast %cst : f32 to vector<8x8xf32>
    %8 = arith.subf %6, %7 : vector<8x8xf32>
    %cst_5 = arith.constant 1.000000e+05 : f32
    %9 = vector.broadcast %cst_5 : f32 to vector<8x8xf32>
    %10 = arith.mulf %9, %8 : vector<8x8xf32>
    %c0_6 = arith.constant 0 : index
    %c0_7 = arith.constant 0 : index
    %c0_8 = arith.constant 0 : index
    %c0_9 = arith.constant 0 : index
    %11 = vector.load %arg1[%c0_6, %c0_7, %c0_8, %c0_9] : memref<1x4x8x30xf32, #tpu.memory_space<vmem>>, vector<1x1x8x30xf32>
    %12 = vector.shape_cast %11 : vector<1x1x8x30xf32> to vector<8x30xf32>
    %c0_10 = arith.constant 0 : index
    %c0_11 = arith.constant 0 : index
    %c0_12 = arith.constant 0 : index
    %c0_13 = arith.constant 0 : index
    %13 = vector.load %arg2[%c0_10, %c0_11, %c0_12, %c0_13] : memref<1x4x8x30xf32, #tpu.memory_space<vmem>>, vector<1x1x8x30xf32>
    %14 = vector.shape_cast %13 : vector<1x1x8x30xf32> to vector<8x30xf32>
    %cst_14 = arith.constant dense<0.000000e+00> : vector<8x8xf32>
    %15 = tpu.matmul %12, %14, %cst_14 {dimension_numbers = #tpu.dot_dimension_numbers<[1], [1], [0], [0], [0, 0, 1, 0], [], []>} : vector<8x30xf32>, vector<8x30xf32>, vector<8x8xf32> -> vector<8x8xf32>
    %16 = arith.addf %15, %10 : vector<8x8xf32>
    %cst_15 = arith.constant 3.750000e-01 : f32
    %17 = vector.broadcast %cst_15 : f32 to vector<8x8xf32>
    %18 = arith.mulf %16, %17 : vector<8x8xf32>
    %cst_16 = arith.constant dense<0xFF800000> : vector<8xf32>
    %19 = vector.multi_reduction <maximumf>, %18, %cst_16 [1] : vector<8x8xf32> to vector<8xf32>
    %20 = vector.shape_cast %19 : vector<8xf32> to vector<8x1xf32>
    %21 = vector.broadcast %20 : vector<8x1xf32> to vector<8x8xf32>
    %22 = arith.subf %18, %21 : vector<8x8xf32>
    %23 = math.exp %22 : vector<8x8xf32>
    %cst_17 = arith.constant dense<0.000000e+00> : vector<8xf32>
    %24 = vector.multi_reduction <add>, %23, %cst_17 [1] : vector<8x8xf32> to vector<8xf32>
    %25 = vector.shape_cast %24 : vector<8xf32> to vector<8x1xf32>
    %26 = tpu.reciprocal %25 {approx = true} : vector<8x1xf32> -> vector<8x1xf32>
    %c0_18 = arith.constant 0 : index
    %c0_19 = arith.constant 0 : index
    %c0_20 = arith.constant 0 : index
    %c0_21 = arith.constant 0 : index
    %27 = vector.load %arg3[%c0_18, %c0_19, %c0_20, %c0_21] : memref<1x4x8x40xf32, #tpu.memory_space<vmem>>, vector<1x1x8x40xf32>
    %28 = vector.shape_cast %27 : vector<1x1x8x40xf32> to vector<8x40xf32>
    %cst_22 = arith.constant dense<0.000000e+00> : vector<8x40xf32>
    %29 = tpu.matmul %23, %28, %cst_22 {dimension_numbers = #tpu.dot_dimension_numbers<[1], [0], [0], [1], [0, 0, 1, 1], [], []>} : vector<8x8xf32>, vector<8x40xf32>, vector<8x40xf32> -> vector<8x40xf32>
    %30 = vector.broadcast %26 : vector<8x1xf32> to vector<8x40xf32>
    %31 = arith.mulf %29, %30 : vector<8x40xf32>
    %c0_23 = arith.constant 0 : index
    %c1 = arith.constant 1 : index
    %c0_24 = arith.constant 0 : index
    %c0_25 = arith.constant 0 : index
    %32 = vector.load %arg1[%c0_23, %c1, %c0_24, %c0_25] : memref<1x4x8x30xf32, #tpu.memory_space<vmem>>, vector<1x1x8x30xf32>
    %33 = vector.shape_cast %32 : vector<1x1x8x30xf32> to vector<8x30xf32>
    %c0_26 = arith.constant 0 : index
    %c1_27 = arith.constant 1 : index
    %c0_28 = arith.constant 0 : index
    %c0_29 = arith.constant 0 : index
    %34 = vector.load %arg2[%c0_26, %c1_27, %c0_28, %c0_29] : memref<1x4x8x30xf32, #tpu.memory_space<vmem>>, vector<1x1x8x30xf32>
    %35 = vector.shape_cast %34 : vector<1x1x8x30xf32> to vector<8x30xf32>
    %cst_30 = arith.constant dense<0.000000e+00> : vector<8x8xf32>
    %36 = tpu.matmul %33, %35, %cst_30 {dimension_numbers = #tpu.dot_dimension_numbers<[1], [1], [0], [0], [0, 0, 1, 0], [], []>} : vector<8x30xf32>, vector<8x30xf32>, vector<8x8xf32> -> vector<8x8xf32>
    %37 = arith.addf %36, %10 : vector<8x8xf32>
    %cst_31 = arith.constant 3.750000e-01 : f32
    %38 = vector.broadcast %cst_31 : f32 to vector<8x8xf32>
    %39 = arith.mulf %37, %38 : vector<8x8xf32>
    %cst_32 = arith.constant dense<0xFF800000> : vector<8xf32>
    %40 = vector.multi_reduction <maximumf>, %39, %cst_32 [1] : vector<8x8xf32> to vector<8xf32>
    %41 = vector.shape_cast %40 : vector<8xf32> to vector<8x1xf32>
    %42 = vector.broadcast %41 : vector<8x1xf32> to vector<8x8xf32>
    %43 = arith.subf %39, %42 : vector<8x8xf32>
    %44 = math.exp %43 : vector<8x8xf32>
    %cst_33 = arith.constant dense<0.000000e+00> : vector<8xf32>
    %45 = vector.multi_reduction <add>, %44, %cst_33 [1] : vector<8x8xf32> to vector<8xf32>
    %46 = vector.shape_cast %45 : vector<8xf32> to vector<8x1xf32>
    %47 = tpu.reciprocal %46 {approx = true} : vector<8x1xf32> -> vector<8x1xf32>
    %c0_34 = arith.constant 0 : index
    %c1_35 = arith.constant 1 : index
    %c0_36 = arith.constant 0 : index
    %c0_37 = arith.constant 0 : index
    %48 = vector.load %arg3[%c0_34, %c1_35, %c0_36, %c0_37] : memref<1x4x8x40xf32, #tpu.memory_space<vmem>>, vector<1x1x8x40xf32>
    %49 = vector.shape_cast %48 : vector<1x1x8x40xf32> to vector<8x40xf32>
    %cst_38 = arith.constant dense<0.000000e+00> : vector<8x40xf32>
    %50 = tpu.matmul %44, %49, %cst_38 {dimension_numbers = #tpu.dot_dimension_numbers<[1], [0], [0], [1], [0, 0, 1, 1], [], []>} : vector<8x8xf32>, vector<8x40xf32>, vector<8x40xf32> -> vector<8x40xf32>
    %51 = vector.broadcast %47 : vector<8x1xf32> to vector<8x40xf32>
    %52 = arith.mulf %50, %51 : vector<8x40xf32>
    %c0_39 = arith.constant 0 : index
    %c2 = arith.constant 2 : index
    %c0_40 = arith.constant 0 : index
    %c0_41 = arith.constant 0 : index
    %53 = vector.load %arg1[%c0_39, %c2, %c0_40, %c0_41] : memref<1x4x8x30xf32, #tpu.memory_space<vmem>>, vector<1x1x8x30xf32>
    %54 = vector.shape_cast %53 : vector<1x1x8x30xf32> to vector<8x30xf32>
    %c0_42 = arith.constant 0 : index
    %c2_43 = arith.constant 2 : index
    %c0_44 = arith.constant 0 : index
    %c0_45 = arith.constant 0 : index
    %55 = vector.load %arg2[%c0_42, %c2_43, %c0_44, %c0_45] : memref<1x4x8x30xf32, #tpu.memory_space<vmem>>, vector<1x1x8x30xf32>
    %56 = vector.shape_cast %55 : vector<1x1x8x30xf32> to vector<8x30xf32>
    %cst_46 = arith.constant dense<0.000000e+00> : vector<8x8xf32>
    %57 = tpu.matmul %54, %56, %cst_46 {dimension_numbers = #tpu.dot_dimension_numbers<[1], [1], [0], [0], [0, 0, 1, 0], [], []>} : vector<8x30xf32>, vector<8x30xf32>, vector<8x8xf32> -> vector<8x8xf32>
    %58 = arith.addf %57, %10 : vector<8x8xf32>
    %cst_47 = arith.constant 3.750000e-01 : f32
    %59 = vector.broadcast %cst_47 : f32 to vector<8x8xf32>
    %60 = arith.mulf %58, %59 : vector<8x8xf32>
    %cst_48 = arith.constant dense<0xFF800000> : vector<8xf32>
    %61 = vector.multi_reduction <maximumf>, %60, %cst_48 [1] : vector<8x8xf32> to vector<8xf32>
    %62 = vector.shape_cast %61 : vector<8xf32> to vector<8x1xf32>
    %63 = vector.broadcast %62 : vector<8x1xf32> to vector<8x8xf32>
    %64 = arith.subf %60, %63 : vector<8x8xf32>
    %65 = math.exp %64 : vector<8x8xf32>
    %cst_49 = arith.constant dense<0.000000e+00> : vector<8xf32>
    %66 = vector.multi_reduction <add>, %65, %cst_49 [1] : vector<8x8xf32> to vector<8xf32>
    %67 = vector.shape_cast %66 : vector<8xf32> to vector<8x1xf32>
    %68 = tpu.reciprocal %67 {approx = true} : vector<8x1xf32> -> vector<8x1xf32>
    %c0_50 = arith.constant 0 : index
    %c2_51 = arith.constant 2 : index
    %c0_52 = arith.constant 0 : index
    %c0_53 = arith.constant 0 : index
    %69 = vector.load %arg3[%c0_50, %c2_51, %c0_52, %c0_53] : memref<1x4x8x40xf32, #tpu.memory_space<vmem>>, vector<1x1x8x40xf32>
    %70 = vector.shape_cast %69 : vector<1x1x8x40xf32> to vector<8x40xf32>
    %cst_54 = arith.constant dense<0.000000e+00> : vector<8x40xf32>
    %71 = tpu.matmul %65, %70, %cst_54 {dimension_numbers = #tpu.dot_dimension_numbers<[1], [0], [0], [1], [0, 0, 1, 1], [], []>} : vector<8x8xf32>, vector<8x40xf32>, vector<8x40xf32> -> vector<8x40xf32>
    %72 = vector.broadcast %68 : vector<8x1xf32> to vector<8x40xf32>
    %73 = arith.mulf %71, %72 : vector<8x40xf32>
    %c0_55 = arith.constant 0 : index
    %c3 = arith.constant 3 : index
    %c0_56 = arith.constant 0 : index
    %c0_57 = arith.constant 0 : index
    %74 = vector.load %arg1[%c0_55, %c3, %c0_56, %c0_57] : memref<1x4x8x30xf32, #tpu.memory_space<vmem>>, vector<1x1x8x30xf32>
    %75 = vector.shape_cast %74 : vector<1x1x8x30xf32> to vector<8x30xf32>
    %c0_58 = arith.constant 0 : index
    %c3_59 = arith.constant 3 : index
    %c0_60 = arith.constant 0 : index
    %c0_61 = arith.constant 0 : index
    %76 = vector.load %arg2[%c0_58, %c3_59, %c0_60, %c0_61] : memref<1x4x8x30xf32, #tpu.memory_space<vmem>>, vector<1x1x8x30xf32>
    %77 = vector.shape_cast %76 : vector<1x1x8x30xf32> to vector<8x30xf32>
    %cst_62 = arith.constant dense<0.000000e+00> : vector<8x8xf32>
    %78 = tpu.matmul %75, %77, %cst_62 {dimension_numbers = #tpu.dot_dimension_numbers<[1], [1], [0], [0], [0, 0, 1, 0], [], []>} : vector<8x30xf32>, vector<8x30xf32>, vector<8x8xf32> -> vector<8x8xf32>
    %79 = arith.addf %78, %10 : vector<8x8xf32>
    %cst_63 = arith.constant 3.750000e-01 : f32
    %80 = vector.broadcast %cst_63 : f32 to vector<8x8xf32>
    %81 = arith.mulf %79, %80 : vector<8x8xf32>
    %cst_64 = arith.constant dense<0xFF800000> : vector<8xf32>
    %82 = vector.multi_reduction <maximumf>, %81, %cst_64 [1] : vector<8x8xf32> to vector<8xf32>
    %83 = vector.shape_cast %82 : vector<8xf32> to vector<8x1xf32>
    %84 = vector.broadcast %83 : vector<8x1xf32> to vector<8x8xf32>
    %85 = arith.subf %81, %84 : vector<8x8xf32>
    %86 = math.exp %85 : vector<8x8xf32>
    %cst_65 = arith.constant dense<0.000000e+00> : vector<8xf32>
    %87 = vector.multi_reduction <add>, %86, %cst_65 [1] : vector<8x8xf32> to vector<8xf32>
    %88 = vector.shape_cast %87 : vector<8xf32> to vector<8x1xf32>
    %89 = tpu.reciprocal %88 {approx = true} : vector<8x1xf32> -> vector<8x1xf32>
    %c0_66 = arith.constant 0 : index
    %c3_67 = arith.constant 3 : index
    %c0_68 = arith.constant 0 : index
    %c0_69 = arith.constant 0 : index
    %90 = vector.load %arg3[%c0_66, %c3_67, %c0_68, %c0_69] : memref<1x4x8x40xf32, #tpu.memory_space<vmem>>, vector<1x1x8x40xf32>
    %91 = vector.shape_cast %90 : vector<1x1x8x40xf32> to vector<8x40xf32>
    %cst_70 = arith.constant dense<0.000000e+00> : vector<8x40xf32>
    %92 = tpu.matmul %86, %91, %cst_70 {dimension_numbers = #tpu.dot_dimension_numbers<[1], [0], [0], [1], [0, 0, 1, 1], [], []>} : vector<8x8xf32>, vector<8x40xf32>, vector<8x40xf32> -> vector<8x40xf32>
    %93 = vector.broadcast %89 : vector<8x1xf32> to vector<8x40xf32>
    %94 = arith.mulf %92, %93 : vector<8x40xf32>
    %95 = tpu.concatenate %31, %52, %73, %94 in 1 : vector<8x40xf32>, vector<8x40xf32>, vector<8x40xf32>, vector<8x40xf32> -> vector<8x160xf32>
    %c0_71 = arith.constant 0 : index
    %c0_72 = arith.constant 0 : index
    %c0_73 = arith.constant 0 : index
    %96 = vector.load %arg6[%c0_71, %c0_72, %c0_73] : memref<1x8x160xf32, #tpu.memory_space<vmem>>, vector<1x8x160xf32>
    %97 = vector.shape_cast %96 : vector<1x8x160xf32> to vector<8x160xf32>
    %98 = vector.shape_cast %95 : vector<8x160xf32> to vector<1x8x160xf32>
    tpu.vector_store %arg6[%c0_71, %c0_72, %c0_73], %98 {strides = array<i32>} : memref<1x8x160xf32, #tpu.memory_space<vmem>>, vector<1x8x160xf32>,
    return
  }
  func.func @transform_0(%arg0: i32) -> (i32, i32, i32, i32) {
    %c0_i32 = arith.constant 0 : i32
    %c0_i32_0 = arith.constant 0 : i32
    %c0_i32_1 = arith.constant 0 : i32
    %c0_i32_2 = arith.constant 0 : i32
    return %arg0, %c0_i32, %c0_i32_0, %c0_i32_1 : i32, i32, i32, i32
  }
  func.func @transform_1(%arg0: i32) -> (i32, i32, i32, i32) {
    %c0_i32 = arith.constant 0 : i32
    %c0_i32_0 = arith.constant 0 : i32
    %c0_i32_1 = arith.constant 0 : i32
    %c0_i32_2 = arith.constant 0 : i32
    return %arg0, %c0_i32, %c0_i32_0, %c0_i32_1 : i32, i32, i32, i32
  }
  func.func @transform_2(%arg0: i32) -> (i32, i32, i32, i32) {
    %c0_i32 = arith.constant 0 : i32
    %c0_i32_0 = arith.constant 0 : i32
    %c0_i32_1 = arith.constant 0 : i32
    %c0_i32_2 = arith.constant 0 : i32
    return %arg0, %c0_i32, %c0_i32_0, %c0_i32_1 : i32, i32, i32, i32
  }
  func.func @transform_3(%arg0: i32) -> (i32, i32, i32) {
    %c0_i32 = arith.constant 0 : i32
    %c0_i32_0 = arith.constant 0 : i32
    %c0_i32_1 = arith.constant 0 : i32
    return %arg0, %c0_i32, %c0_i32_0 : i32, i32, i32
  }
  func.func @transform_4(%arg0: i32) -> (i32, i32, i32) {
    %c0_i32 = arith.constant 0 : i32
    %c0_i32_0 = arith.constant 0 : i32
    %c0_i32_1 = arith.constant 0 : i32
    return %arg0, %c0_i32, %c0_i32_0 : i32, i32, i32
  }
  func.func @transform_5(%arg0: i32) -> (i32, i32, i32) {
    %c0_i32 = arith.constant 0 : i32
    %c0_i32_0 = arith.constant 0 : i32
    %c0_i32_1 = arith.constant 0 : i32
    return %arg0, %c0_i32, %c0_i32_0 : i32, i32, i32
  }
}

</mosaic_0001>

<llo_original>
// kernel: tpu_custom_call.1
$region0: #{tpu_custom_call.1}
  #allocation0 [shape = 'u32[]', space=smem, size = 0x4, offset = 0x4, fixed_abs, tag = 'smem constant byte address 0x4 - core index']
  #allocation1 [shape = 'u32[144,128]{1,0:T(1,128)}', space=vmem, size = 0x12000, scoped, tag = 'internal scratch']
  %s0 = inlined_call_operand.hbm [shape: f32[2,4,8,30], index: 0, kind: input, shape index: {}]
  %s1 = inlined_call_operand.hbm [shape: f32[2,4,8,30], index: 1, kind: input, shape index: {}]
  %s2 = inlined_call_operand.hbm [shape: f32[2,4,8,40], index: 2, kind: input, shape index: {}]
  %s3 = inlined_call_operand.vmem [shape: f32[2,8,1], index: 3, kind: input, shape index: {}]
  %s4 = inlined_call_operand.vmem [shape: f32[2,1,8], index: 4, kind: input, shape index: {}]
  %s5 = inlined_call_operand.hbm [shape: f32[2,8,160], index: 5, kind: output, shape index: {}]
  %s6 = sld [smem:[#allocation0]]
  $region65: #{tpu_custom_call.1} parent=0
    _
  %s8 = ssub.s32 1, %s6
  %s9 = scalar_select 0, %s8, %s6
  $region1: #{tpu_custom_call.1} parent=0
    #allocation2 [shape = 'u8[32768]{0}', space=vmem, size = 0x8000, scoped, tag = 'input window, operand 0']
    #allocation3 [shape = 's32[2]{0}', space=sflag, size = 0x8, scoped, tag = 'scoped memory for tpu_custom_call.1']
    #allocation4 [shape = 's32[2]{0}', space=sflag, size = 0x8, scoped, tag = 'scoped memory for tpu_custom_call.1']
    #allocation5 [shape = 'u8[32768]{0}', space=vmem, size = 0x8000, scoped, tag = 'input window, operand 1']
    #allocation6 [shape = 's32[2]{0}', space=sflag, size = 0x8, scoped, tag = 'scoped memory for tpu_custom_call.1']
    #allocation7 [shape = 'u8[32768]{0}', space=vmem, size = 0x8000, scoped, tag = 'input window, operand 2']
    #allocation8 [shape = 'u8[16384]{0}', space=vmem, size = 0x4000, scoped, tag = 'output window, operand 0']
    %10 = vsyncpa [#allocation3], 0
    %s11 = scalar_lea.sflag [#allocation3], 1
    %12 = vsyncpa %s11, 0
    %13 = vsyncpa [#allocation6], 0
    %s14 = scalar_lea.sflag [#allocation6], 1
    %15 = vsyncpa %s14, 0
    %16 = vsyncpa [#allocation4], 0
    %s17 = scalar_lea.sflag [#allocation4], 1
    %18 = vsyncpa %s17, 0
    loop: start=0, step=1, limit=4
    $region2: #{tpu_custom_call.1} parent=1 // loop_pre_header
      _
    $region3: #{tpu_custom_call.1} parent=1 // loop_header
      %s20 = sphi 0, %s24
      %p21 = scmp.ge.s32.totalorder %s20, 4
      %s30 = sphi 0, %s32
      %s33 = sphi 0, %s30
      %s34 = sphi 0, %s33
      %s50 = sphi 0, %s34
      %s56 = sphi 0, %s58
      %s59 = sphi 0, %s56
      %s60 = sphi 0, %s59
      %s76 = sphi 0, %s60
      %s82 = sphi 0, %s84
      %s85 = sphi 0, %s82
      %s86 = sphi 0, %s85
      %s102 = sphi 0, %s86
      %s108 = sphi 0, %s110
      %s111 = sphi 0, %s108
      %s112 = sphi 0, %s111
      %s128 = sphi 0, %s112
      %s134 = sphi 0, %s136
      %s137 = sphi 0, %s134
      %s138 = sphi 0, %s137
      %s154 = sphi 0, %s138
      %s160 = sphi 0, %s162
      %s163 = sphi 0, %s160
      %s164 = sphi 0, %s163
      %s180 = sphi 0, %s164
    $region4: #{tpu_custom_call.1} parent=1 // loop_header_branch
      %23 = sbr.rel (%p21) target = $region8
    $region5: #{tpu_custom_call.1} parent=1 // loop_body
      %s25 = ssub.s32 %s20, 1
      %s26 = ssub.s32 %s20, 2
      %s27 = sadd.s32 %s20, 1
      %s28 = ssub.s32 %s20, %s27
      %p29 = scmp.eq.s32.totalorder %s28, 0
      %s31 = sadd.s32 %s30, 1
      %s32 = scalar_select %p29, %s30, %s31
      %p35 = pneg %p29
      %p36 = scmp.eq.s32.totalorder %s20, 1
      %p37 = por %p35, %p36
      %p38 = scmp.ne.s32.totalorder %s30, %s33
      %p39 = scmp.eq.s32.totalorder %s20, 0
      %p40 = por %p38, %p39
      %p41 = scmp.ne.s32.totalorder %s30, %s33
      %p42 = scmp.eq.s32.totalorder %s25, 1
      %p43 = por %p41, %p42
      %p44 = scmp.ne.s32.totalorder %s33, %s34
      %p45 = scmp.eq.s32.totalorder %s25, 0
      %p46 = por %p44, %p45
      %p47 = scmp.ne.s32.totalorder %s33, %s34
      %p48 = scmp.eq.s32.totalorder %s26, 1
      %p49 = por %p47, %p48
      %p51 = scmp.ne.s32.totalorder %s34, %s50
      %p52 = scmp.eq.s32.totalorder %s26, 0
      %p53 = por %p51, %p52
      %s54 = ssub.s32 %s20, %s27
      %p55 = scmp.eq.s32.totalorder %s54, 0
      %s57 = sadd.s32 %s56, 1
      %s58 = scalar_select %p55, %s56, %s57
      %p61 = pneg %p55
      %p62 = scmp.eq.s32.totalorder %s20, 1
      %p63 = por %p61, %p62
      %p64 = scmp.ne.s32.totalorder %s56, %s59
      %p65 = scmp.eq.s32.totalorder %s20, 0
      %p66 = por %p64, %p65
      %p67 = scmp.ne.s32.totalorder %s56, %s59
      %p68 = scmp.eq.s32.totalorder %s25, 1
      %p69 = por %p67, %p68
      %p70 = scmp.ne.s32.totalorder %s59, %s60
      %p71 = scmp.eq.s32.totalorder %s25, 0
      %p72 = por %p70, %p71
      %p73 = scmp.ne.s32.totalorder %s59, %s60
      %p74 = scmp.eq.s32.totalorder %s26, 1
      %p75 = por %p73, %p74
      %p77 = scmp.ne.s32.totalorder %s60, %s76
      %p78 = scmp.eq.s32.totalorder %s26, 0
      %p79 = por %p77, %p78
      %s80 = ssub.s32 %s20, %s27
      %p81 = scmp.eq.s32.totalorder %s80, 0
      %s83 = sadd.s32 %s82, 1
      %s84 = scalar_select %p81, %s82, %s83
      %p87 = pneg %p81
      %p88 = scmp.eq.s32.totalorder %s20, 1
      %p89 = por %p87, %p88
      %p90 = scmp.ne.s32.totalorder %s82, %s85
      %p91 = scmp.eq.s32.totalorder %s20, 0
      %p92 = por %p90, %p91
      %p93 = scmp.ne.s32.totalorder %s82, %s85
      %p94 = scmp.eq.s32.totalorder %s25, 1
      %p95 = por %p93, %p94
      %p96 = scmp.ne.s32.totalorder %s85, %s86
      %p97 = scmp.eq.s32.totalorder %s25, 0
      %p98 = por %p96, %p97
      %p99 = scmp.ne.s32.totalorder %s85, %s86
      %p100 = scmp.eq.s32.totalorder %s26, 1
      %p101 = por %p99, %p100
      %p103 = scmp.ne.s32.totalorder %s86, %s102
      %p104 = scmp.eq.s32.totalorder %s26, 0
      %p105 = por %p103, %p104
      %s106 = ssub.s32 %s20, %s27
      %p107 = scmp.eq.s32.totalorder %s106, 0
      %s109 = sadd.s32 %s108, 1
      %s110 = scalar_select %p107, %s108, %s109
      %p113 = pneg %p107
      %p114 = scmp.eq.s32.totalorder %s20, 1
      %p115 = por %p113, %p114
      %p116 = scmp.ne.s32.totalorder %s108, %s111
      %p117 = scmp.eq.s32.totalorder %s20, 0
      %p118 = por %p116, %p117
      %p119 = scmp.ne.s32.totalorder %s108, %s111
      %p120 = scmp.eq.s32.totalorder %s25, 1
      %p121 = por %p119, %p120
      %p122 = scmp.ne.s32.totalorder %s111, %s112
      %p123 = scmp.eq.s32.totalorder %s25, 0
      %p124 = por %p122, %p123
      %p125 = scmp.ne.s32.totalorder %s111, %s112
      %p126 = scmp.eq.s32.totalorder %s26, 1
      %p127 = por %p125, %p126
      %p129 = scmp.ne.s32.totalorder %s112, %s128
      %p130 = scmp.eq.s32.totalorder %s26, 0
      %p131 = por %p129, %p130
      %s132 = ssub.s32 %s20, %s27
      %p133 = scmp.eq.s32.totalorder %s132, 0
      %s135 = sadd.s32 %s134, 1
      %s136 = scalar_select %p133, %s134, %s135
      %p139 = pneg %p133
      %p140 = scmp.eq.s32.totalorder %s20, 1
      %p141 = por %p139, %p140
      %p142 = scmp.ne.s32.totalorder %s134, %s137
      %p143 = scmp.eq.s32.totalorder %s20, 0
      %p144 = por %p142, %p143
      %p145 = scmp.ne.s32.totalorder %s134, %s137
      %p146 = scmp.eq.s32.totalorder %s25, 1
      %p147 = por %p145, %p146
      %p148 = scmp.ne.s32.totalorder %s137, %s138
      %p149 = scmp.eq.s32.totalorder %s25, 0
      %p150 = por %p148, %p149
      %p151 = scmp.ne.s32.totalorder %s137, %s138
      %p152 = scmp.eq.s32.totalorder %s26, 1
      %p153 = por %p151, %p152
      %p155 = scmp.ne.s32.totalorder %s138, %s154
      %p156 = scmp.eq.s32.totalorder %s26, 0
      %p157 = por %p155, %p156
      %s158 = ssub.s32 %s20, %s27
      %p159 = scmp.eq.s32.totalorder %s158, 0
      %s161 = sadd.s32 %s160, 1
      %s162 = scalar_select %p159, %s160, %s161
      %p165 = pneg %p159
      %p166 = scmp.eq.s32.totalorder %s20, 1
      %p167 = por %p165, %p166
      %p168 = scmp.ne.s32.totalorder %s160, %s163
      %p169 = scmp.eq.s32.totalorder %s20, 0
      %p170 = por %p168, %p169
      %p171 = scmp.ne.s32.totalorder %s160, %s163
      %p172 = scmp.eq.s32.totalorder %s25, 1
      %p173 = por %p171, %p172
      %p174 = scmp.ne.s32.totalorder %s163, %s164
      %p175 = scmp.eq.s32.totalorder %s25, 0
      %p176 = por %p174, %p175
      %p177 = scmp.ne.s32.totalorder %s163, %s164
      %p178 = scmp.eq.s32.totalorder %s26, 1
      %p179 = por %p177, %p178
      %p181 = scmp.ne.s32.totalorder %s164, %s180
      %p182 = scmp.eq.s32.totalorder %s26, 0
      %p183 = por %p181, %p182
      %p184 = scmp.le.s32.totalorder 1, %s20
      %p185 = scmp.lt.s32.totalorder %s20, 3
      %p186 = pnand %p184, %p185
      %p187 = pneg %p186
      // Predicated region
      $region9: #{tpu_custom_call.1} parent=5 // pred_check
        _
      $region10: #{tpu_custom_call.1} parent=5 // pred_check_branch
        %189 = sbr.rel (%p186) target = $region12
      $region11: #{tpu_custom_call.1} parent=5 // pred_region
        %s190 = ssub.s32 %s20, 1
      $region12: #{tpu_custom_call.1} parent=5 // pred_fallthru
        _
      %p191 = scmp.lt.s32.totalorder %s20, 2
      // Predicated region
      $region13: #{tpu_custom_call.1} parent=5 // pred_check
        %p192 = pneg %p191
      $region14: #{tpu_custom_call.1} parent=5 // pred_check_branch
        %194 = sbr.rel (%p192) target = $region16
      $region15: #{tpu_custom_call.1} parent=5 // pred_region
        // Predicated region
        $region17: #{tpu_custom_call.1} parent=15 // pred_check
          %p195 = pneg %p40
        $region18: #{tpu_custom_call.1} parent=15 // pred_check_branch
          %197 = sbr.rel (%p195) target = $region20
        $region19: #{tpu_custom_call.1} parent=15 // pred_region
          %s198 = sand.u32 %s30, 1
          %s199 = scalar_lea.sflag [#allocation3], %s198
          %s200 = sand.u32 %s30, 1
          %s201 = smul.addr %s200, 32
          %s202 = scalar_lea.vmem [#allocation2], %s201
          %s204 = ssub.s32 512, 512
          %205 = vsyncadd %s199, %s204
          %s206 = smul.addr %s20, 4
          %s207 = smul.addr %s206, 128
          %s208 = scalar_lea.hbm %s0, %s207
          %s209 = sshll.u32 %s202, 4
          %s210 = int_to_ptr.vmem [resolvable:$true] %s209
          %215 = dma.hbm_to_vmem [thread:$0]  %s208, 512, %s210, %s199, 128, 128, 8
        $region20: #{tpu_custom_call.1} parent=15 // pred_fallthru
          _
        // Predicated region
        $region21: #{tpu_custom_call.1} parent=15 // pred_check
          %p216 = pneg %p66
        $region22: #{tpu_custom_call.1} parent=15 // pred_check_branch
          %218 = sbr.rel (%p216) target = $region24
        $region23: #{tpu_custom_call.1} parent=15 // pred_region
          %s219 = sand.u32 %s20, 1
          %s220 = scalar_lea.sflag [#allocation6], %s219
          %s221 = sand.u32 %s56, 1
          %s222 = smul.addr %s221, 32
          %s223 = scalar_lea.vmem [#allocation5], %s222
          %s225 = ssub.s32 512, 512
          %226 = vsyncadd %s220, %s225
          %s227 = smul.addr %s20, 4
          %s228 = smul.addr %s227, 128
          %s229 = scalar_lea.hbm %s1, %s228
          %s230 = sshll.u32 %s223, 4
          %s231 = int_to_ptr.vmem [resolvable:$true] %s230
          %236 = dma.hbm_to_vmem [thread:$0]  %s229, 512, %s231, %s220, 128, 128, 8
        $region24: #{tpu_custom_call.1} parent=15 // pred_fallthru
          _
        // Predicated region
        $region25: #{tpu_custom_call.1} parent=15 // pred_check
          %p237 = pneg %p92
        $region26: #{tpu_custom_call.1} parent=15 // pred_check_branch
          %239 = sbr.rel (%p237) target = $region28
        $region27: #{tpu_custom_call.1} parent=15 // pred_region
          %s240 = sand.u32 %s20, 1
          %s241 = scalar_lea.sflag [#allocation6], %s240
          %s242 = sand.u32 %s82, 1
          %s243 = smul.addr %s242, 32
          %s244 = scalar_lea.vmem [#allocation7], %s243
          %s246 = ssub.s32 512, 512
          %247 = vsyncadd %s241, %s246
          %s248 = smul.addr %s20, 4
          %s249 = smul.addr %s248, 128
          %s250 = scalar_lea.hbm %s2, %s249
          %s251 = sshll.u32 %s244, 4
          %s252 = int_to_ptr.vmem [resolvable:$true] %s251
          %257 = dma.hbm_to_vmem [thread:$0]  %s250, 512, %s252, %s241, 128, 128, 8
        $region28: #{tpu_custom_call.1} parent=15 // pred_fallthru
          _
        // Predicated region
        $region29: #{tpu_custom_call.1} parent=15 // pred_check
          %p258 = pneg %p118
        $region30: #{tpu_custom_call.1} parent=15 // pred_check_branch
          %260 = sbr.rel (%p258) target = $region32
        $region31: #{tpu_custom_call.1} parent=15 // pred_region
          %p261 = scmp.lt.s32.totalorder %s20, 1
          %s262 = scalar_select %p261, %s20, 1
          %s263 = smul.addr %s262, 8
          %s264 = scalar_lea.vmem %s3, %s263
        $region32: #{tpu_custom_call.1} parent=15 // pred_fallthru
          _
        // Predicated region
        $region33: #{tpu_custom_call.1} parent=15 // pred_check
          %p265 = pneg %p144
        $region34: #{tpu_custom_call.1} parent=15 // pred_check_branch
          %267 = sbr.rel (%p265) target = $region36
        $region35: #{tpu_custom_call.1} parent=15 // pred_region
          %p268 = scmp.lt.s32.totalorder %s20, 1
          %s269 = scalar_select %p268, %s20, 1
          %s270 = scalar_lea.vmem %s4, %s269
        $region36: #{tpu_custom_call.1} parent=15 // pred_fallthru
          _
      $region16: #{tpu_custom_call.1} parent=5 // pred_fallthru
        _
      %p271 = scmp.le.s32.totalorder 1, %s20
      %p272 = scmp.lt.s32.totalorder %s20, 3
      %p273 = pnand %p271, %p272
      %p274 = pneg %p273
      // Predicated region
      $region37: #{tpu_custom_call.1} parent=5 // pred_check
        _
      $region38: #{tpu_custom_call.1} parent=5 // pred_check_branch
        %276 = sbr.rel (%p273) target = $region40
      $region39: #{tpu_custom_call.1} parent=5 // pred_region
        %s277 = ssub.s32 %s20, 1
        %s278 = sand.u32 %s33, 1
        %s279 = scalar_lea.sflag [#allocation3], %s278
        %s280 = sand.u32 %s33, 1
        %s281 = smul.addr %s280, 32
        %s282 = scalar_lea.vmem [#allocation2], %s281
        // Predicated region
        $region41: #{tpu_custom_call.1} parent=39 // pred_check
          %p283 = pneg %p46
        $region42: #{tpu_custom_call.1} parent=39 // pred_check_branch
          %285 = sbr.rel (%p283) target = $region44
        $region43: #{tpu_custom_call.1} parent=39 // pred_region
          %286 = dma.done %s279, 512
        $region44: #{tpu_custom_call.1} parent=39 // pred_fallthru
          _
        %s287 = sand.u32 %s25, 1
        %s288 = scalar_lea.sflag [#allocation6], %s287
        %s289 = sand.u32 %s59, 1
        %s290 = smul.addr %s289, 32
        %s291 = scalar_lea.vmem [#allocation5], %s290
        // Predicated region
        $region45: #{tpu_custom_call.1} parent=39 // pred_check
          %p292 = pneg %p72
        $region46: #{tpu_custom_call.1} parent=39 // pred_check_branch
          %294 = sbr.rel (%p292) target = $region48
        $region47: #{tpu_custom_call.1} parent=39 // pred_region
          %295 = dma.done %s288, 512
        $region48: #{tpu_custom_call.1} parent=39 // pred_fallthru
          _
        %s296 = sand.u32 %s25, 1
        %s297 = scalar_lea.sflag [#allocation6], %s296
        %s298 = sand.u32 %s85, 1
        %s299 = smul.addr %s298, 32
        %s300 = scalar_lea.vmem [#allocation7], %s299
        // Predicated region
        $region49: #{tpu_custom_call.1} parent=39 // pred_check
          %p301 = pneg %p98
        $region50: #{tpu_custom_call.1} parent=39 // pred_check_branch
          %303 = sbr.rel (%p301) target = $region52
        $region51: #{tpu_custom_call.1} parent=39 // pred_region
          %304 = dma.done %s297, 512
        $region52: #{tpu_custom_call.1} parent=39 // pred_fallthru
          _
        %s305 = sand.u32 %s33, 1
        %s306 = scalar_lea.sflag [#allocation3], %s305
        %s307 = sand.u32 %s33, 1
        %s308 = smul.addr %s307, 32
        %s309 = scalar_lea.vmem [#allocation2], %s308
        %p310 = pneg %p46
        %p311 = pneg %p43
        %s312 = sand.u32 %s25, 1
        %s313 = scalar_lea.sflag [#allocation6], %s312
        %s314 = sand.u32 %s59, 1
        %s315 = smul.addr %s314, 32
        %s316 = scalar_lea.vmem [#allocation5], %s315
        %p317 = pneg %p72
        %p318 = pneg %p69
        %s319 = sand.u32 %s25, 1
        %s320 = scalar_lea.sflag [#allocation6], %s319
        %s321 = sand.u32 %s85, 1
        %s322 = smul.addr %s321, 32
        %s323 = scalar_lea.vmem [#allocation7], %s322
        %p324 = pneg %p98
        %p325 = pneg %p95
        %p326 = scmp.lt.s32.totalorder %s25, 1
        %s327 = scalar_select %p326, %s25, 1
        %s328 = smul.addr %s327, 8
        %s329 = scalar_lea.vmem %s3, %s328
        %p330 = pneg %p124
        %p331 = pneg %p121
        %p332 = scmp.lt.s32.totalorder %s25, 1
        %s333 = scalar_select %p332, %s25, 1
        %s334 = scalar_lea.vmem %s4, %s333
        %p335 = pneg %p150
        %p336 = pneg %p147
        %p337 = pneg %p176
        %p338 = pneg %p173
        %s339 = sand.u32 %s163, 1
        %s340 = scalar_lea.sflag [#allocation4], %s339
        %s341 = sand.u32 %s163, 1
        %s342 = smul.addr %s341, 16
        %s343 = scalar_lea.vmem [#allocation8], %s342
        %p344 = scmp.lt.s32.totalorder %s25, 1
        %s345 = scalar_select %p344, %s25, 1
        %s346 = smul.addr %s345, 8
        %s347 = scalar_lea.vmem %s3, %s346
        %p348 = scmp.lt.s32.totalorder %s25, 1
        %s349 = scalar_select %p348, %s25, 1
        %s350 = scalar_lea.vmem %s4, %s349
        %v351 = vld [vmem:[%s347] sm:$0xff]
        %v352 = vld [vmem:[%s350] sm:$0x1]
        %354 = vset.pattern.permute.xlu0 0
        %355 = vperm.xlu0 %354, %v351
        %v356 = vpop.permute.xlu0 %355
        %v359 = vlaneseq
        %v360 = vshrl.u32 %v359, 7
        %v361 = vsub.s32 0, %v360
        %v362 = vrot.slane %v352, %v361
        %v364 = vmul.f32 %v356, %v362
        %v365 = vsub.f32 %v364, 1.0
        %v366 = vmul.f32 %v365, 100000.0
        %v367 = vld [vmem:[%s282] sm:$0xff]
        %v368 = vld [vmem:[%s291] sm:$0xff]
        %vm369 = vcmask 244736
        %v371 = vsel %vm369, %v367, 0
        %v374 = vsel %vm369, %v368, 0
        %376 = vmatprep.subr.mxu0 0.0
        %377 = vmatpush1.xpose.msra.mxu0 %v374
        %378 = vmatprep.subr.mxu0 0.0
        %379 = vmatpush1.xpose.msra.mxu0 0.0
        %380 = vmatprep.subr.mxu0 0.0
        %381 = vmatpush1.xpose.msra.mxu0 0.0
        %382 = vmatprep.subr.mxu0 0.0
        %383 = vmatpush1.xpose.msra.mxu0 0.0
        %384 = vmatprep.subr.mxu0 0.0
        %385 = vmatpush1.xpose.msra.mxu0 0.0
        %386 = vmatprep.subr.mxu0 0.0
        %387 = vmatpush1.xpose.msra.mxu0 0.0
        %388 = vmatprep.subr.mxu0 0.0
        %389 = vmatpush1.xpose.msra.mxu0 0.0
        %390 = vmatprep.subr.mxu0 0.0
        %391 = vmatpush1.xpose.msra.mxu0 0.0
        %392 = vmatprep.subr.mxu0 0.0
        %393 = vmatpush1.xpose.msra.mxu0 0.0
        %394 = vmatprep.subr.mxu0 0.0
        %395 = vmatpush1.xpose.msra.mxu0 0.0
        %396 = vmatprep.subr.mxu0 0.0
        %397 = vmatpush1.xpose.msra.mxu0 0.0
        %398 = vmatprep.subr.mxu0 0.0
        %399 = vmatpush1.xpose.msra.mxu0 0.0
        %400 = vmatprep.subr.mxu0 0.0
        %401 = vmatpush1.xpose.msra.mxu0 0.0
        %402 = vmatprep.subr.mxu0 0.0
        %403 = vmatpush1.xpose.msra.mxu0 0.0
        %404 = vmatprep.subr.mxu0 0.0
        %405 = vmatpush1.xpose.msra.mxu0 0.0
        %406 = vmatprep.subr.mxu0 0.0
        %407 = vmatpush1.xpose.msra.mxu0 0.0
        %408 = vmatprep.subr.mxu0 0.0
        %409 = vmatpush1.xpose.msra.mxu0 0.0
        %410 = vmatprep.subr.mxu0 0.0
        %411 = vmatpush1.xpose.msra.mxu0 0.0
        %412 = vmatprep.subr.mxu0 0.0
        %413 = vmatpush1.xpose.msra.mxu0 0.0
        %414 = vmatprep.subr.mxu0 0.0
        %415 = vmatpush1.xpose.msra.mxu0 0.0
        %416 = vmatprep.subr.mxu0 0.0
        %417 = vmatpush1.xpose.msra.mxu0 0.0
        %418 = vmatprep.subr.mxu0 0.0
        %419 = vmatpush1.xpose.msra.mxu0 0.0
        %420 = vmatprep.subr.mxu0 0.0
        %421 = vmatpush1.xpose.msra.mxu0 0.0
        %422 = vmatprep.subr.mxu0 0.0
        %423 = vmatpush1.xpose.msra.mxu0 0.0
        %424 = vmatprep.subr.mxu0 0.0
        %425 = vmatpush1.xpose.msra.mxu0 0.0
        %426 = vmatprep.subr.mxu0 0.0
        %427 = vmatpush1.xpose.msra.mxu0 0.0
        %428 = vmatprep.subr.mxu0 0.0
        %429 = vmatpush1.xpose.msra.mxu0 0.0
        %430 = vmatprep.subr.mxu0 0.0
        %431 = vmatpush1.xpose.msra.mxu0 0.0
        %432 = vmatprep.subr.mxu0 0.0
        %433 = vmatpush1.xpose.msra.mxu0 0.0
        %434 = vmatprep.subr.mxu0 0.0
        %435 = vmatpush1.xpose.msra.mxu0 0.0
        %436 = vmatprep.subr.mxu0 0.0
        %437 = vmatpush1.xpose.msra.mxu0 0.0
        %438 = vmatprep.subr.mxu0 0.0
        %439 = vmatpush1.xpose.msra.mxu0 0.0
        %440 = vmatprep.mubr.f32.mxu0 0.0
        %441 = vmatmul.mubr.f32.gmra.mrb[0].mxu0 %v371
        %v442 = vpop.f32.mrb[0].mxu0
        %v443 = vadd.f32 %v366, %v442
        %v444 = vpop.f32.mrb[0].mxu0
        %445 = vdwg.mxu0
        %v446 = vmul.f32 %v443, 0.375
        %vm447 = vcmask 64512
        %v448 = vsel %vm447, %v446, -inf
        %449 = vmax.xlane.f32.xlu0 %v448
        %v450 = vpop.xlane.xlu0 %449
        %v451 = vsub.f32 %v446, %v450
        %v452 = vmul.f32 %v451, 1.442695
        %v453 = vpow.pop %v452
        %v454 = vsel %vm447, %v453, 0.0
        %455 = vadd.xlane.f32.xlu0 %v454
        %v456 = vpop.xlane.xlu0 %455
        %v457 = vrcp.pop %v456
        %v458 = vld [vmem:[%s300] sm:$0xff]
        %v460 = vsel %vm447, %v453, 0
        %462 = vmatprep.subr.mxu0 0.0
        %463 = vmatpush1.msra.mxu0 %v458
        %464 = vmatprep.subr.mxu0 0.0
        %465 = vmatpush1.msra.mxu0 0.0
        %466 = vmatprep.subr.mxu0 0.0
        %467 = vmatpush1.msra.mxu0 0.0
        %468 = vmatprep.subr.mxu0 0.0
        %469 = vmatpush1.msra.mxu0 0.0
        %470 = vmatprep.subr.mxu0 0.0
        %471 = vmatpush1.msra.mxu0 0.0
        %472 = vmatprep.subr.mxu0 0.0
        %473 = vmatpush1.msra.mxu0 0.0
        %474 = vmatprep.subr.mxu0 0.0
        %475 = vmatpush1.msra.mxu0 0.0
        %476 = vmatprep.subr.mxu0 0.0
        %477 = vmatpush1.msra.mxu0 0.0
        %478 = vmatprep.subr.mxu0 0.0
        %479 = vmatpush1.msra.mxu0 0.0
        %480 = vmatprep.subr.mxu0 0.0
        %481 = vmatpush1.msra.mxu0 0.0
        %482 = vmatprep.subr.mxu0 0.0
        %483 = vmatpush1.msra.mxu0 0.0
        %484 = vmatprep.subr.mxu0 0.0
        %485 = vmatpush1.msra.mxu0 0.0
        %486 = vmatprep.subr.mxu0 0.0
        %487 = vmatpush1.msra.mxu0 0.0
        %488 = vmatprep.subr.mxu0 0.0
        %489 = vmatpush1.msra.mxu0 0.0
        %490 = vmatprep.subr.mxu0 0.0
        %491 = vmatpush1.msra.mxu0 0.0
        %492 = vmatprep.subr.mxu0 0.0
        %493 = vmatpush1.msra.mxu0 0.0
        %494 = vmatprep.subr.mxu0 0.0
        %495 = vmatpush1.msra.mxu0 0.0
        %496 = vmatprep.subr.mxu0 0.0
        %497 = vmatpush1.msra.mxu0 0.0
        %498 = vmatprep.subr.mxu0 0.0
        %499 = vmatpush1.msra.mxu0 0.0
        %500 = vmatprep.subr.mxu0 0.0
        %501 = vmatpush1.msra.mxu0 0.0
        %502 = vmatprep.subr.mxu0 0.0
        %503 = vmatpush1.msra.mxu0 0.0
        %504 = vmatprep.subr.mxu0 0.0
        %505 = vmatpush1.msra.mxu0 0.0
        %506 = vmatprep.subr.mxu0 0.0
        %507 = vmatpush1.msra.mxu0 0.0
        %508 = vmatprep.subr.mxu0 0.0
        %509 = vmatpush1.msra.mxu0 0.0
        %510 = vmatprep.subr.mxu0 0.0
        %511 = vmatpush1.msra.mxu0 0.0
        %512 = vmatprep.subr.mxu0 0.0
        %513 = vmatpush1.msra.mxu0 0.0
        %514 = vmatprep.subr.mxu0 0.0
        %515 = vmatpush1.msra.mxu0 0.0
        %516 = vmatprep.subr.mxu0 0.0
        %517 = vmatpush1.msra.mxu0 0.0
        %518 = vmatprep.subr.mxu0 0.0
        %519 = vmatpush1.msra.mxu0 0.0
        %520 = vmatprep.subr.mxu0 0.0
        %521 = vmatpush1.msra.mxu0 0.0
        %522 = vmatprep.subr.mxu0 0.0
        %523 = vmatpush1.msra.mxu0 0.0
        %524 = vmatprep.subr.mxu0 0.0
        %525 = vmatpush1.msra.mxu0 0.0
        %526 = vmatprep.mubr.f32.mxu0 0.0
        %527 = vmatmul.mubr.f32.gmra.mrb[0].mxu0 %v460
        %v528 = vpop.f32.mrb[0].mxu0
        %v529 = vadd.f32 0.0, %v528
        %v530 = vpop.f32.mrb[0].mxu0
        %531 = vdwg.mxu0
        %v532 = vmul.f32 %v529, %v457
        %s533 = scalar_lea.vmem %s282, 8 [#allocation2]
        %v534 = vld [vmem:[%s533] sm:$0xff]
        %s535 = scalar_lea.vmem %s291, 8 [#allocation5]
        %v536 = vld [vmem:[%s535] sm:$0xff]
        %v538 = vsel %vm369, %v534, 0
        %v541 = vsel %vm369, %v536, 0
        %543 = vmatprep.subr.mxu0 0.0
        %544 = vmatpush1.xpose.msra.mxu0 %v541
        %545 = vmatprep.subr.mxu0 0.0
        %546 = vmatpush1.xpose.msra.mxu0 0.0
        %547 = vmatprep.subr.mxu0 0.0
        %548 = vmatpush1.xpose.msra.mxu0 0.0
        %549 = vmatprep.subr.mxu0 0.0
        %550 = vmatpush1.xpose.msra.mxu0 0.0
        %551 = vmatprep.subr.mxu0 0.0
        %552 = vmatpush1.xpose.msra.mxu0 0.0
        %553 = vmatprep.subr.mxu0 0.0
        %554 = vmatpush1.xpose.msra.mxu0 0.0
        %555 = vmatprep.subr.mxu0 0.0
        %556 = vmatpush1.xpose.msra.mxu0 0.0
        %557 = vmatprep.subr.mxu0 0.0
        %558 = vmatpush1.xpose.msra.mxu0 0.0
        %559 = vmatprep.subr.mxu0 0.0
        %560 = vmatpush1.xpose.msra.mxu0 0.0
        %561 = vmatprep.subr.mxu0 0.0
        %562 = vmatpush1.xpose.msra.mxu0 0.0
        %563 = vmatprep.subr.mxu0 0.0
        %564 = vmatpush1.xpose.msra.mxu0 0.0
        %565 = vmatprep.subr.mxu0 0.0
        %566 = vmatpush1.xpose.msra.mxu0 0.0
        %567 = vmatprep.subr.mxu0 0.0
        %568 = vmatpush1.xpose.msra.mxu0 0.0
        %569 = vmatprep.subr.mxu0 0.0
        %570 = vmatpush1.xpose.msra.mxu0 0.0
        %571 = vmatprep.subr.mxu0 0.0
        %572 = vmatpush1.xpose.msra.mxu0 0.0
        %573 = vmatprep.subr.mxu0 0.0
        %574 = vmatpush1.xpose.msra.mxu0 0.0
        %575 = vmatprep.subr.mxu0 0.0
        %576 = vmatpush1.xpose.msra.mxu0 0.0
        %577 = vmatprep.subr.mxu0 0.0
        %578 = vmatpush1.xpose.msra.mxu0 0.0
        %579 = vmatprep.subr.mxu0 0.0
        %580 = vmatpush1.xpose.msra.mxu0 0.0
        %581 = vmatprep.subr.mxu0 0.0
        %582 = vmatpush1.xpose.msra.mxu0 0.0
        %583 = vmatprep.subr.mxu0 0.0
        %584 = vmatpush1.xpose.msra.mxu0 0.0
        %585 = vmatprep.subr.mxu0 0.0
        %586 = vmatpush1.xpose.msra.mxu0 0.0
        %587 = vmatprep.subr.mxu0 0.0
        %588 = vmatpush1.xpose.msra.mxu0 0.0
        %589 = vmatprep.subr.mxu0 0.0
        %590 = vmatpush1.xpose.msra.mxu0 0.0
        %591 = vmatprep.subr.mxu0 0.0
        %592 = vmatpush1.xpose.msra.mxu0 0.0
        %593 = vmatprep.subr.mxu0 0.0
        %594 = vmatpush1.xpose.msra.mxu0 0.0
        %595 = vmatprep.subr.mxu0 0.0
        %596 = vmatpush1.xpose.msra.mxu0 0.0
        %597 = vmatprep.subr.mxu0 0.0
        %598 = vmatpush1.xpose.msra.mxu0 0.0
        %599 = vmatprep.subr.mxu0 0.0
        %600 = vmatpush1.xpose.msra.mxu0 0.0
        %601 = vmatprep.subr.mxu0 0.0
        %602 = vmatpush1.xpose.msra.mxu0 0.0
        %603 = vmatprep.subr.mxu0 0.0
        %604 = vmatpush1.xpose.msra.mxu0 0.0
        %605 = vmatprep.subr.mxu0 0.0
        %606 = vmatpush1.xpose.msra.mxu0 0.0
        %607 = vmatprep.mubr.f32.mxu0 0.0
        %608 = vmatmul.mubr.f32.gmra.mrb[0].mxu0 %v538
        %v609 = vpop.f32.mrb[0].mxu0
        %v610 = vadd.f32 %v366, %v609
        %v611 = vpop.f32.mrb[0].mxu0
        %612 = vdwg.mxu0
        %v613 = vmul.f32 %v610, 0.375
        %v614 = vsel %vm447, %v613, -inf
        %615 = vmax.xlane.f32.xlu0 %v614
        %v616 = vpop.xlane.xlu0 %615
        %v617 = vsub.f32 %v613, %v616
        %v618 = vmul.f32 %v617, 1.442695
        %v619 = vpow.pop %v618
        %v620 = vsel %vm447, %v619, 0.0
        %621 = vadd.xlane.f32.xlu0 %v620
        %v622 = vpop.xlane.xlu0 %621
        %v623 = vrcp.pop %v622
        %s624 = scalar_lea.vmem %s300, 8 [#allocation7]
        %v625 = vld [vmem:[%s624] sm:$0xff]
        %v627 = vsel %vm447, %v619, 0
        %629 = vmatprep.subr.mxu0 0.0
        %630 = vmatpush1.msra.mxu0 %v625
        %631 = vmatprep.subr.mxu0 0.0
        %632 = vmatpush1.msra.mxu0 0.0
        %633 = vmatprep.subr.mxu0 0.0
        %634 = vmatpush1.msra.mxu0 0.0
        %635 = vmatprep.subr.mxu0 0.0
        %636 = vmatpush1.msra.mxu0 0.0
        %637 = vmatprep.subr.mxu0 0.0
        %638 = vmatpush1.msra.mxu0 0.0
        %639 = vmatprep.subr.mxu0 0.0
        %640 = vmatpush1.msra.mxu0 0.0
        %641 = vmatprep.subr.mxu0 0.0
        %642 = vmatpush1.msra.mxu0 0.0
        %643 = vmatprep.subr.mxu0 0.0
        %644 = vmatpush1.msra.mxu0 0.0
        %645 = vmatprep.subr.mxu0 0.0
        %646 = vmatpush1.msra.mxu0 0.0
        %647 = vmatprep.subr.mxu0 0.0
        %648 = vmatpush1.msra.mxu0 0.0
        %649 = vmatprep.subr.mxu0 0.0
        %650 = vmatpush1.msra.mxu0 0.0
        %651 = vmatprep.subr.mxu0 0.0
        %652 = vmatpush1.msra.mxu0 0.0
        %653 = vmatprep.subr.mxu0 0.0
        %654 = vmatpush1.msra.mxu0 0.0
        %655 = vmatprep.subr.mxu0 0.0
        %656 = vmatpush1.msra.mxu0 0.0
        %657 = vmatprep.subr.mxu0 0.0
        %658 = vmatpush1.msra.mxu0 0.0
        %659 = vmatprep.subr.mxu0 0.0
        %660 = vmatpush1.msra.mxu0 0.0
        %661 = vmatprep.subr.mxu0 0.0
        %662 = vmatpush1.msra.mxu0 0.0
        %663 = vmatprep.subr.mxu0 0.0
        %664 = vmatpush1.msra.mxu0 0.0
        %665 = vmatprep.subr.mxu0 0.0
        %666 = vmatpush1.msra.mxu0 0.0
        %667 = vmatprep.subr.mxu0 0.0
        %668 = vmatpush1.msra.mxu0 0.0
        %669 = vmatprep.subr.mxu0 0.0
        %670 = vmatpush1.msra.mxu0 0.0
        %671 = vmatprep.subr.mxu0 0.0
        %672 = vmatpush1.msra.mxu0 0.0
        %673 = vmatprep.subr.mxu0 0.0
        %674 = vmatpush1.msra.mxu0 0.0
        %675 = vmatprep.subr.mxu0 0.0
        %676 = vmatpush1.msra.mxu0 0.0
        %677 = vmatprep.subr.mxu0 0.0
        %678 = vmatpush1.msra.mxu0 0.0
        %679 = vmatprep.subr.mxu0 0.0
        %680 = vmatpush1.msra.mxu0 0.0
        %681 = vmatprep.subr.mxu0 0.0
        %682 = vmatpush1.msra.mxu0 0.0
        %683 = vmatprep.subr.mxu0 0.0
        %684 = vmatpush1.msra.mxu0 0.0
        %685 = vmatprep.subr.mxu0 0.0
        %686 = vmatpush1.msra.mxu0 0.0
        %687 = vmatprep.subr.mxu0 0.0
        %688 = vmatpush1.msra.mxu0 0.0
        %689 = vmatprep.subr.mxu0 0.0
        %690 = vmatpush1.msra.mxu0 0.0
        %691 = vmatprep.subr.mxu0 0.0
        %692 = vmatpush1.msra.mxu0 0.0
        %693 = vmatprep.mubr.f32.mxu0 0.0
        %694 = vmatmul.mubr.f32.gmra.mrb[0].mxu0 %v627
        %v695 = vpop.f32.mrb[0].mxu0
        %v696 = vadd.f32 0.0, %v695
        %v697 = vpop.f32.mrb[0].mxu0
        %698 = vdwg.mxu0
        %v699 = vmul.f32 %v696, %v623
        %s700 = scalar_lea.vmem %s282, 16 [#allocation2]
        %v701 = vld [vmem:[%s700] sm:$0xff]
        %s702 = scalar_lea.vmem %s291, 16 [#allocation5]
        %v703 = vld [vmem:[%s702] sm:$0xff]
        %v705 = vsel %vm369, %v701, 0
        %v708 = vsel %vm369, %v703, 0
        %710 = vmatprep.subr.mxu0 0.0
        %711 = vmatpush1.xpose.msra.mxu0 %v708
        %712 = vmatprep.subr.mxu0 0.0
        %713 = vmatpush1.xpose.msra.mxu0 0.0
        %714 = vmatprep.subr.mxu0 0.0
        %715 = vmatpush1.xpose.msra.mxu0 0.0
        %716 = vmatprep.subr.mxu0 0.0
        %717 = vmatpush1.xpose.msra.mxu0 0.0
        %718 = vmatprep.subr.mxu0 0.0
        %719 = vmatpush1.xpose.msra.mxu0 0.0
        %720 = vmatprep.subr.mxu0 0.0
        %721 = vmatpush1.xpose.msra.mxu0 0.0
        %722 = vmatprep.subr.mxu0 0.0
        %723 = vmatpush1.xpose.msra.mxu0 0.0
        %724 = vmatprep.subr.mxu0 0.0
        %725 = vmatpush1.xpose.msra.mxu0 0.0
        %726 = vmatprep.subr.mxu0 0.0
        %727 = vmatpush1.xpose.msra.mxu0 0.0
        %728 = vmatprep.subr.mxu0 0.0
        %729 = vmatpush1.xpose.msra.mxu0 0.0
        %730 = vmatprep.subr.mxu0 0.0
        %731 = vmatpush1.xpose.msra.mxu0 0.0
        %732 = vmatprep.subr.mxu0 0.0
        %733 = vmatpush1.xpose.msra.mxu0 0.0
        %734 = vmatprep.subr.mxu0 0.0
        %735 = vmatpush1.xpose.msra.mxu0 0.0
        %736 = vmatprep.subr.mxu0 0.0
        %737 = vmatpush1.xpose.msra.mxu0 0.0
        %738 = vmatprep.subr.mxu0 0.0
        %739 = vmatpush1.xpose.msra.mxu0 0.0
        %740 = vmatprep.subr.mxu0 0.0
        %741 = vmatpush1.xpose.msra.mxu0 0.0
        %742 = vmatprep.subr.mxu0 0.0
        %743 = vmatpush1.xpose.msra.mxu0 0.0
        %744 = vmatprep.subr.mxu0 0.0
        %745 = vmatpush1.xpose.msra.mxu0 0.0
        %746 = vmatprep.subr.mxu0 0.0
        %747 = vmatpush1.xpose.msra.mxu0 0.0
        %748 = vmatprep.subr.mxu0 0.0
        %749 = vmatpush1.xpose.msra.mxu0 0.0
        %750 = vmatprep.subr.mxu0 0.0
        %751 = vmatpush1.xpose.msra.mxu0 0.0
        %752 = vmatprep.subr.mxu0 0.0
        %753 = vmatpush1.xpose.msra.mxu0 0.0
        %754 = vmatprep.subr.mxu0 0.0
        %755 = vmatpush1.xpose.msra.mxu0 0.0
        %756 = vmatprep.subr.mxu0 0.0
        %757 = vmatpush1.xpose.msra.mxu0 0.0
        %758 = vmatprep.subr.mxu0 0.0
        %759 = vmatpush1.xpose.msra.mxu0 0.0
        %760 = vmatprep.subr.mxu0 0.0
        %761 = vmatpush1.xpose.msra.mxu0 0.0
        %762 = vmatprep.subr.mxu0 0.0
        %763 = vmatpush1.xpose.msra.mxu0 0.0
        %764 = vmatprep.subr.mxu0 0.0
        %765 = vmatpush1.xpose.msra.mxu0 0.0
        %766 = vmatprep.subr.mxu0 0.0
        %767 = vmatpush1.xpose.msra.mxu0 0.0
        %768 = vmatprep.subr.mxu0 0.0
        %769 = vmatpush1.xpose.msra.mxu0 0.0
        %770 = vmatprep.subr.mxu0 0.0
        %771 = vmatpush1.xpose.msra.mxu0 0.0
        %772 = vmatprep.subr.mxu0 0.0
        %773 = vmatpush1.xpose.msra.mxu0 0.0
        %774 = vmatprep.mubr.f32.mxu0 0.0
        %775 = vmatmul.mubr.f32.gmra.mrb[0].mxu0 %v705
        %v776 = vpop.f32.mrb[0].mxu0
        %v777 = vadd.f32 %v366, %v776
        %v778 = vpop.f32.mrb[0].mxu0
        %779 = vdwg.mxu0
        %v780 = vmul.f32 %v777, 0.375
        %v781 = vsel %vm447, %v780, -inf
        %782 = vmax.xlane.f32.xlu0 %v781
        %v783 = vpop.xlane.xlu0 %782
        %v784 = vsub.f32 %v780, %v783
        %v785 = vmul.f32 %v784, 1.442695
        %v786 = vpow.pop %v785
        %v787 = vsel %vm447, %v786, 0.0
        %788 = vadd.xlane.f32.xlu0 %v787
        %v789 = vpop.xlane.xlu0 %788
        %v790 = vrcp.pop %v789
        %s791 = scalar_lea.vmem %s300, 16 [#allocation7]
        %v792 = vld [vmem:[%s791] sm:$0xff]
        %v794 = vsel %vm447, %v786, 0
        %796 = vmatprep.subr.mxu0 0.0
        %797 = vmatpush1.msra.mxu0 %v792
        %798 = vmatprep.subr.mxu0 0.0
        %799 = vmatpush1.msra.mxu0 0.0
        %800 = vmatprep.subr.mxu0 0.0
        %801 = vmatpush1.msra.mxu0 0.0
        %802 = vmatprep.subr.mxu0 0.0
        %803 = vmatpush1.msra.mxu0 0.0
        %804 = vmatprep.subr.mxu0 0.0
        %805 = vmatpush1.msra.mxu0 0.0
        %806 = vmatprep.subr.mxu0 0.0
        %807 = vmatpush1.msra.mxu0 0.0
        %808 = vmatprep.subr.mxu0 0.0
        %809 = vmatpush1.msra.mxu0 0.0
        %810 = vmatprep.subr.mxu0 0.0
        %811 = vmatpush1.msra.mxu0 0.0
        %812 = vmatprep.subr.mxu0 0.0
        %813 = vmatpush1.msra.mxu0 0.0
        %814 = vmatprep.subr.mxu0 0.0
        %815 = vmatpush1.msra.mxu0 0.0
        %816 = vmatprep.subr.mxu0 0.0
        %817 = vmatpush1.msra.mxu0 0.0
        %818 = vmatprep.subr.mxu0 0.0
        %819 = vmatpush1.msra.mxu0 0.0
        %820 = vmatprep.subr.mxu0 0.0
        %821 = vmatpush1.msra.mxu0 0.0
        %822 = vmatprep.subr.mxu0 0.0
        %823 = vmatpush1.msra.mxu0 0.0
        %824 = vmatprep.subr.mxu0 0.0
        %825 = vmatpush1.msra.mxu0 0.0
        %826 = vmatprep.subr.mxu0 0.0
        %827 = vmatpush1.msra.mxu0 0.0
        %828 = vmatprep.subr.mxu0 0.0
        %829 = vmatpush1.msra.mxu0 0.0
        %830 = vmatprep.subr.mxu0 0.0
        %831 = vmatpush1.msra.mxu0 0.0
        %832 = vmatprep.subr.mxu0 0.0
        %833 = vmatpush1.msra.mxu0 0.0
        %834 = vmatprep.subr.mxu0 0.0
        %835 = vmatpush1.msra.mxu0 0.0
        %836 = vmatprep.subr.mxu0 0.0
        %837 = vmatpush1.msra.mxu0 0.0
        %838 = vmatprep.subr.mxu0 0.0
        %839 = vmatpush1.msra.mxu0 0.0
        %840 = vmatprep.subr.mxu0 0.0
        %841 = vmatpush1.msra.mxu0 0.0
        %842 = vmatprep.subr.mxu0 0.0
        %843 = vmatpush1.msra.mxu0 0.0
        %844 = vmatprep.subr.mxu0 0.0
        %845 = vmatpush1.msra.mxu0 0.0
        %846 = vmatprep.subr.mxu0 0.0
        %847 = vmatpush1.msra.mxu0 0.0
        %848 = vmatprep.subr.mxu0 0.0
        %849 = vmatpush1.msra.mxu0 0.0
        %850 = vmatprep.subr.mxu0 0.0
        %851 = vmatpush1.msra.mxu0 0.0
        %852 = vmatprep.subr.mxu0 0.0
        %853 = vmatpush1.msra.mxu0 0.0
        %854 = vmatprep.subr.mxu0 0.0
        %855 = vmatpush1.msra.mxu0 0.0
        %856 = vmatprep.subr.mxu0 0.0
        %857 = vmatpush1.msra.mxu0 0.0
        %858 = vmatprep.subr.mxu0 0.0
        %859 = vmatpush1.msra.mxu0 0.0
        %860 = vmatprep.mubr.f32.mxu0 0.0
        %861 = vmatmul.mubr.f32.gmra.mrb[0].mxu0 %v794
        %v862 = vpop.f32.mrb[0].mxu0
        %v863 = vadd.f32 0.0, %v862
        %v864 = vpop.f32.mrb[0].mxu0
        %865 = vdwg.mxu0
        %v866 = vmul.f32 %v863, %v790
        %s867 = scalar_lea.vmem %s282, 24 [#allocation2]
        %v868 = vld [vmem:[%s867] sm:$0xff]
        %s869 = scalar_lea.vmem %s291, 24 [#allocation5]
        %v870 = vld [vmem:[%s869] sm:$0xff]
        %v872 = vsel %vm369, %v868, 0
        %v875 = vsel %vm369, %v870, 0
        %877 = vmatprep.subr.mxu0 0.0
        %878 = vmatpush1.xpose.msra.mxu0 %v875
        %879 = vmatprep.subr.mxu0 0.0
        %880 = vmatpush1.xpose.msra.mxu0 0.0
        %881 = vmatprep.subr.mxu0 0.0
        %882 = vmatpush1.xpose.msra.mxu0 0.0
        %883 = vmatprep.subr.mxu0 0.0
        %884 = vmatpush1.xpose.msra.mxu0 0.0
        %885 = vmatprep.subr.mxu0 0.0
        %886 = vmatpush1.xpose.msra.mxu0 0.0
        %887 = vmatprep.subr.mxu0 0.0
        %888 = vmatpush1.xpose.msra.mxu0 0.0
        %889 = vmatprep.subr.mxu0 0.0
        %890 = vmatpush1.xpose.msra.mxu0 0.0
        %891 = vmatprep.subr.mxu0 0.0
        %892 = vmatpush1.xpose.msra.mxu0 0.0
        %893 = vmatprep.subr.mxu0 0.0
        %894 = vmatpush1.xpose.msra.mxu0 0.0
        %895 = vmatprep.subr.mxu0 0.0
        %896 = vmatpush1.xpose.msra.mxu0 0.0
        %897 = vmatprep.subr.mxu0 0.0
        %898 = vmatpush1.xpose.msra.mxu0 0.0
        %899 = vmatprep.subr.mxu0 0.0
        %900 = vmatpush1.xpose.msra.mxu0 0.0
        %901 = vmatprep.subr.mxu0 0.0
        %902 = vmatpush1.xpose.msra.mxu0 0.0
        %903 = vmatprep.subr.mxu0 0.0
        %904 = vmatpush1.xpose.msra.mxu0 0.0
        %905 = vmatprep.subr.mxu0 0.0
        %906 = vmatpush1.xpose.msra.mxu0 0.0
        %907 = vmatprep.subr.mxu0 0.0
        %908 = vmatpush1.xpose.msra.mxu0 0.0
        %909 = vmatprep.subr.mxu0 0.0
        %910 = vmatpush1.xpose.msra.mxu0 0.0
        %911 = vmatprep.subr.mxu0 0.0
        %912 = vmatpush1.xpose.msra.mxu0 0.0
        %913 = vmatprep.subr.mxu0 0.0
        %914 = vmatpush1.xpose.msra.mxu0 0.0
        %915 = vmatprep.subr.mxu0 0.0
        %916 = vmatpush1.xpose.msra.mxu0 0.0
        %917 = vmatprep.subr.mxu0 0.0
        %918 = vmatpush1.xpose.msra.mxu0 0.0
        %919 = vmatprep.subr.mxu0 0.0
        %920 = vmatpush1.xpose.msra.mxu0 0.0
        %921 = vmatprep.subr.mxu0 0.0
        %922 = vmatpush1.xpose.msra.mxu0 0.0
        %923 = vmatprep.subr.mxu0 0.0
        %924 = vmatpush1.xpose.msra.mxu0 0.0
        %925 = vmatprep.subr.mxu0 0.0
        %926 = vmatpush1.xpose.msra.mxu0 0.0
        %927 = vmatprep.subr.mxu0 0.0
        %928 = vmatpush1.xpose.msra.mxu0 0.0
        %929 = vmatprep.subr.mxu0 0.0
        %930 = vmatpush1.xpose.msra.mxu0 0.0
        %931 = vmatprep.subr.mxu0 0.0
        %932 = vmatpush1.xpose.msra.mxu0 0.0
        %933 = vmatprep.subr.mxu0 0.0
        %934 = vmatpush1.xpose.msra.mxu0 0.0
        %935 = vmatprep.subr.mxu0 0.0
        %936 = vmatpush1.xpose.msra.mxu0 0.0
        %937 = vmatprep.subr.mxu0 0.0
        %938 = vmatpush1.xpose.msra.mxu0 0.0
        %939 = vmatprep.subr.mxu0 0.0
        %940 = vmatpush1.xpose.msra.mxu0 0.0
        %941 = vmatprep.mubr.f32.mxu0 0.0
        %942 = vmatmul.mubr.f32.gmra.mrb[0].mxu0 %v872
        %v943 = vpop.f32.mrb[0].mxu0
        %v944 = vadd.f32 %v366, %v943
        %v945 = vpop.f32.mrb[0].mxu0
        %946 = vdwg.mxu0
        %v947 = vmul.f32 %v944, 0.375
        %v948 = vsel %vm447, %v947, -inf
        %949 = vmax.xlane.f32.xlu0 %v948
        %v950 = vpop.xlane.xlu0 %949
        %v951 = vsub.f32 %v947, %v950
        %v952 = vmul.f32 %v951, 1.442695
        %v953 = vpow.pop %v952
        %v954 = vsel %vm447, %v953, 0.0
        %955 = vadd.xlane.f32.xlu0 %v954
        %v956 = vpop.xlane.xlu0 %955
        %v957 = vrcp.pop %v956
        %s958 = scalar_lea.vmem %s300, 24 [#allocation7]
        %v959 = vld [vmem:[%s958] sm:$0xff]
        %v961 = vsel %vm447, %v953, 0
        %963 = vmatprep.subr.mxu0 0.0
        %964 = vmatpush1.msra.mxu0 %v959
        %965 = vmatprep.subr.mxu0 0.0
        %966 = vmatpush1.msra.mxu0 0.0
        %967 = vmatprep.subr.mxu0 0.0
        %968 = vmatpush1.msra.mxu0 0.0
        %969 = vmatprep.subr.mxu0 0.0
        %970 = vmatpush1.msra.mxu0 0.0
        %971 = vmatprep.subr.mxu0 0.0
        %972 = vmatpush1.msra.mxu0 0.0
        %973 = vmatprep.subr.mxu0 0.0
        %974 = vmatpush1.msra.mxu0 0.0
        %975 = vmatprep.subr.mxu0 0.0
        %976 = vmatpush1.msra.mxu0 0.0
        %977 = vmatprep.subr.mxu0 0.0
        %978 = vmatpush1.msra.mxu0 0.0
        %979 = vmatprep.subr.mxu0 0.0
        %980 = vmatpush1.msra.mxu0 0.0
        %981 = vmatprep.subr.mxu0 0.0
        %982 = vmatpush1.msra.mxu0 0.0
        %983 = vmatprep.subr.mxu0 0.0
        %984 = vmatpush1.msra.mxu0 0.0
        %985 = vmatprep.subr.mxu0 0.0
        %986 = vmatpush1.msra.mxu0 0.0
        %987 = vmatprep.subr.mxu0 0.0
        %988 = vmatpush1.msra.mxu0 0.0
        %989 = vmatprep.subr.mxu0 0.0
        %990 = vmatpush1.msra.mxu0 0.0
        %991 = vmatprep.subr.mxu0 0.0
        %992 = vmatpush1.msra.mxu0 0.0
        %993 = vmatprep.subr.mxu0 0.0
        %994 = vmatpush1.msra.mxu0 0.0
        %995 = vmatprep.subr.mxu0 0.0
        %996 = vmatpush1.msra.mxu0 0.0
        %997 = vmatprep.subr.mxu0 0.0
        %998 = vmatpush1.msra.mxu0 0.0
        %999 = vmatprep.subr.mxu0 0.0
        %1000 = vmatpush1.msra.mxu0 0.0
        %1001 = vmatprep.subr.mxu0 0.0
        %1002 = vmatpush1.msra.mxu0 0.0
        %1003 = vmatprep.subr.mxu0 0.0
        %1004 = vmatpush1.msra.mxu0 0.0
        %1005 = vmatprep.subr.mxu0 0.0
        %1006 = vmatpush1.msra.mxu0 0.0
        %1007 = vmatprep.subr.mxu0 0.0
        %1008 = vmatpush1.msra.mxu0 0.0
        %1009 = vmatprep.subr.mxu0 0.0
        %1010 = vmatpush1.msra.mxu0 0.0
        %1011 = vmatprep.subr.mxu0 0.0
        %1012 = vmatpush1.msra.mxu0 0.0
        %1013 = vmatprep.subr.mxu0 0.0
        %1014 = vmatpush1.msra.mxu0 0.0
        %1015 = vmatprep.subr.mxu0 0.0
        %1016 = vmatpush1.msra.mxu0 0.0
        %1017 = vmatprep.subr.mxu0 0.0
        %1018 = vmatpush1.msra.mxu0 0.0
        %1019 = vmatprep.subr.mxu0 0.0
        %1020 = vmatpush1.msra.mxu0 0.0
        %1021 = vmatprep.subr.mxu0 0.0
        %1022 = vmatpush1.msra.mxu0 0.0
        %1023 = vmatprep.subr.mxu0 0.0
        %1024 = vmatpush1.msra.mxu0 0.0
        %1025 = vmatprep.subr.mxu0 0.0
        %1026 = vmatpush1.msra.mxu0 0.0
        %1027 = vmatprep.mubr.f32.mxu0 0.0
        %1028 = vmatmul.mubr.f32.gmra.mrb[0].mxu0 %v961
        %v1029 = vpop.f32.mrb[0].mxu0
        %v1030 = vadd.f32 0.0, %v1029
        %v1031 = vpop.f32.mrb[0].mxu0
        %1032 = vdwg.mxu0
        %v1033 = vmul.f32 %v1030, %v957
        %1035 = vrot.lane.b32.xlu0 %v699, 40
        %v1036 = vpop.permute.xlu0 %1035
        %1039 = vrot.lane.b32.xlu0 %v866, 80
        %v1040 = vpop.permute.xlu0 %1039
        %1043 = vrot.lane.b32.xlu0 %v1033, 120
        %v1044 = vpop.permute.xlu0 %1043
        %vm1046 = vcmask 326656
        %v1047 = vsel %vm1046, %v532, %v1036
        %vm1048 = vcmask 654336
        %v1049 = vsel %vm1048, %v1047, %v1040
        %vm1050 = vcmask 982016
        %v1051 = vsel %vm1050, %v1049, %v1044
        %1052 = vst [vmem:[%s343] sm:$0xff] %v1051
        %vm1053 = vcmask 261120
        %1054 = vst.msk [vmem:[%s343 + $0x8] sm:$0xff] %vm1053, %v1044
        %s1055 = sand.u32 %s163, 1
        %s1056 = scalar_lea.sflag [#allocation4], %s1055
        %s1057 = sand.u32 %s163, 1
        %s1058 = smul.addr %s1057, 16
        %s1059 = scalar_lea.vmem [#allocation8], %s1058
        // Predicated region
        $region53: #{tpu_custom_call.1} parent=39 // pred_check
          %p1060 = pneg %p173
        $region54: #{tpu_custom_call.1} parent=39 // pred_check_branch
          %1062 = sbr.rel (%p1060) target = $region56
        $region55: #{tpu_custom_call.1} parent=39 // pred_region
          %s1064 = ssub.s32 256, 256
          %1065 = vsyncadd %s1056, %s1064
          %s1066 = smul.addr %s25, 2
          %s1067 = smul.addr %s1066, 128
          %s1068 = scalar_lea.hbm %s5, %s1067
          %s1070 = sshll.u32 %s1059, 4
          %s1071 = int_to_ptr.vmem [resolvable:$true] %s1070
          %1073 = dma.vmem_to_hbm [thread:$0]  %s1071, 256, %s1068, %s1056
        $region56: #{tpu_custom_call.1} parent=39 // pred_fallthru
          _
      $region40: #{tpu_custom_call.1} parent=5 // pred_fallthru
        _
      %p1074 = scmp.le.s32.totalorder 2, %s20
      // Predicated region
      $region57: #{tpu_custom_call.1} parent=5 // pred_check
        %p1075 = pneg %p1074
      $region58: #{tpu_custom_call.1} parent=5 // pred_check_branch
        %1077 = sbr.rel (%p1075) target = $region60
      $region59: #{tpu_custom_call.1} parent=5 // pred_region
        %s1078 = ssub.s32 %s20, 2
        // Predicated region
        $region61: #{tpu_custom_call.1} parent=59 // pred_check
          %p1079 = pneg %p179
        $region62: #{tpu_custom_call.1} parent=59 // pred_check_branch
          %1081 = sbr.rel (%p1079) target = $region64
        $region63: #{tpu_custom_call.1} parent=59 // pred_region
          %s1082 = sand.u32 %s164, 1
          %s1083 = scalar_lea.sflag [#allocation4], %s1082
          %s1084 = sand.u32 %s164, 1
          %s1085 = smul.addr %s1084, 16
          %s1086 = scalar_lea.vmem [#allocation8], %s1085
          %1087 = dma.done %s1083, 256
        $region64: #{tpu_custom_call.1} parent=59 // pred_fallthru
          _
      $region60: #{tpu_custom_call.1} parent=5 // pred_fallthru
        _
    $region6: #{tpu_custom_call.1} parent=1 // loop_footer
      %s24 = sadd.s32 1, %s20
    $region7: #{tpu_custom_call.1} parent=1 // loop_footer_branch
      %19 = sbr.rel target = $region3
    $region8: #{tpu_custom_call.1} parent=1 // loop_exit
      _
    %1088 = vsyncpa [#allocation3], 1
    %s1089 = scalar_lea.sflag [#allocation3], 1
    %1090 = vsyncpa %s1089, 1
    %1091 = vsyncpa [#allocation6], 1
    %s1092 = scalar_lea.sflag [#allocation6], 1
    %1093 = vsyncpa %s1092, 1
    %1094 = vsyncpa [#allocation4], 1
    %s1095 = scalar_lea.sflag [#allocation4], 1
    %1096 = vsyncpa %s1095, 1

</llo_original>
